<compile_context>
chip_gen: v7x
topology: tpu7x:2x2x1
jax: 0.10.0
libtpu: 0.0.40
codegen_flags: <defaults>
</compile_context>

<pallas_src>
import functools

import jax
import jax.numpy as jnp
from jax import lax
from jax.experimental import pallas as pl
from jax.experimental.pallas import tpu as pltpu


def _abs_pow(x, alpha):
    if alpha == 1:
        return jnp.abs(x)
    if alpha == 2:
        return x * x                      # |x|^2 == x*x, abs not needed
    if isinstance(alpha, int):
        return jnp.abs(x) ** alpha        # integer-pow path (repeated VPU muls)
    return jnp.abs(x) ** alpha


def _gradient_loss_kernel(gen_ref, gt_ref, out_ref, prev_ref, *, alpha):
    # grid = (batch blocks [parallel], H tiles [arbitrary, innermost])
    j = pl.program_id(1)

    @pl.when(j == 0)
    def _():
        out_ref[...] = jnp.zeros_like(out_ref)     # per-batch-block partial sums
        prev_ref[...] = jnp.zeros_like(prev_ref)   # top zero-padding row

    c = gen_ref.shape[1]
    # Channel-summed difference D = sum_c (gt - gen), accumulated one channel
    # slice at a time (avoids a full (bn, c, bh, w) f32 temporary).
    d = gt_ref[:, 0].astype(jnp.float32) - gen_ref[:, 0].astype(jnp.float32)
    for ci in range(1, c):
        d = d + (gt_ref[:, ci].astype(jnp.float32)
                 - gen_ref[:, ci].astype(jnp.float32))
    # d: (block_n, block_h, w)

    prev_row = prev_ref[...]                 # last row of previous H tile (or 0)
    prev_ref[...] = d[:, -1:, :]             # carry halo row for the next H tile

    # dx: left-neighbour difference along W (lane axis); column 0 sees zero pad.
    shifted_x = pltpu.roll(d, 1, 2)
    col = lax.broadcasted_iota(jnp.int32, d.shape, 2)
    dx = d - jnp.where(col > 0, shifted_x, 0.0)

    # dy: up-neighbour difference along H (sublane axis); row 0 of the tile sees
    # the carried last row of the previous tile (zeros for the topmost tile).
    shifted_y = pltpu.roll(d, 1, 1)
    row = lax.broadcasted_iota(jnp.int32, d.shape, 1)
    dy = d - jnp.where(row > 0, shifted_y, prev_row)

    cost = _abs_pow(dx, alpha) + _abs_pow(dy, alpha)
    # Keep W as the lane axis; only sublane/batch reductions happen per step.
    out_ref[...] += jnp.sum(cost, axis=(0, 1), keepdims=True)


def gradient_loss(gen_frames: jax.Array, gt_frames: jax.Array, alpha) -> jax.Array:
    assert gen_frames.shape == gt_frames.shape
    n, c, h, w = gen_frames.shape
    itemsize = jnp.dtype(gen_frames.dtype).itemsize

    # Integer exponents take the cheap integer-pow / x*x path.
    if float(alpha) == float(int(alpha)):
        alpha_static = int(alpha)
    else:
        alpha_static = float(alpha)

    # --- tile selection -----------------------------------------------------
    # Cap the f32 working slab (block_n*block_h*w elements) at ~2 MiB and the
    # per-input HBM block at ~6 MiB.  2 inputs x 2 pipeline buffers plus the
    # elementwise f32 temporaries stay well inside the explicit 48 MiB VMEM
    # limit on v5e / v6e / v7x.
    slab_cap_elems = (2 * 1024 * 1024) // 4
    in_cap_elems = (6 * 1024 * 1024) // max(c * itemsize, 1)
    cap = max(min(slab_cap_elems, in_cap_elems), w)   # never below one row

    image_elems = h * w
    if image_elems <= cap:
        # Whole images per block; tile over batch only.
        block_h = h
        block_n = 1
        max_bn = max(n // 2, 1)   # keep >= 2 batch blocks so v7x megacore splits
        for cand in range(max_bn, 0, -1):
            if n % cand == 0 and cand * image_elems <= cap:
                block_n = cand
                break
    else:
        # Spatial H tiling (one image at a time) with a one-row carried halo.
        block_n = 1
        block_h = h                       # fallback: whole image (rare, odd H)
        start = h - (h % 8)
        for cand in range(start, 0, -8):  # multiples of 8 (sublane tiling rule)
            if h % cand == 0 and cand * w <= cap:
                block_h = cand
                break
        # TODO(synk): no W tiling; a single row wider than the VMEM budget is
        # not further split (not expected for image-like inputs).

    grid = (n // block_n, h // block_h)

    kernel = functools.partial(_gradient_loss_kernel, alpha=alpha_static)

    partials = pl.pallas_call(
        kernel,
        out_shape=jax.ShapeDtypeStruct((grid[0], 1, w), jnp.float32),
        grid_spec=pltpu.PrefetchScalarGridSpec(
            num_scalar_prefetch=0,
            grid=grid,
            in_specs=[
                pl.BlockSpec((block_n, c, block_h, w), lambda i, j: (i, 0, j, 0)),
                pl.BlockSpec((block_n, c, block_h, w), lambda i, j: (i, 0, j, 0)),
            ],
            # One lane-dense partial-sum row per batch block; resident across
            # the (arbitrary) H axis, written back when the batch block changes.
            out_specs=pl.BlockSpec((1, 1, w), lambda i, j: (i, 0, 0)),
            # Halo: last D row of the previous H tile (per batch block).
            scratch_shapes=[pltpu.VMEM((block_n, 1, w), jnp.float32)],
        ),
        compiler_params=pltpu.CompilerParams(
            dimension_semantics=("parallel", "arbitrary"),
            vmem_limit_bytes=48 * 1024 * 1024,
        ),
    )(gen_frames, gt_frames)

    # Final tiny reduction + mean (conv output has a single channel -> n*h*w).
    return jnp.sum(partials) * (1.0 / float(n * h * w))


if __name__ == "__main__":
    alpha = 2      # module hyperparameters from __init__(alpha, channels, device)
    channels = 4

    key = jax.random.PRNGKey(0)
    k1, k2 = jax.random.split(key)
    # NCHW like PyTorch; batch=4 so the parallel batch axis has >1 block.
    gen_frames = jax.random.normal(k1, (4, channels, 16, 16), dtype=jnp.float32)
    gt_frames = jax.random.normal(k2, (4, channels, 16, 16), dtype=jnp.float32)

    loss = gradient_loss(gen_frames, gt_frames, alpha)
    loss = jax.block_until_ready(loss)

    # Plain-JAX reference mirroring the PyTorch module exactly.
    def ref_loss(gen, gt, a):
        def grads(x):
            s = jnp.sum(x.astype(jnp.float32), axis=1)   # conv filter sums channels
            sx = jnp.pad(s, ((0, 0), (0, 0), (1, 0)))    # pad W on the left
            dx = sx[:, :, 1:] - sx[:, :, :-1]
            sy = jnp.pad(s, ((0, 0), (1, 0), (0, 0)))    # pad H on top
            dy = sy[:, 1:, :] - sy[:, :-1, :]
            return dx, dy

        gen_dx, gen_dy = grads(gen)
        gt_dx, gt_dy = grads(gt)
        gdx = jnp.abs(gt_dx - gen_dx)
        gdy = jnp.abs(gt_dy - gen_dy)
        return jnp.mean(gdx ** a + gdy ** a)

    ref = ref_loss(gen_frames, gt_frames, alpha)
    assert jnp.allclose(loss, ref, rtol=1e-5, atol=1e-6), (loss, ref)

    print("KERNEL_OK")
</pallas_src>

<mosaic_0001>
module attributes {stable_mosaic.version = 11 : i64} {
  func.func @_gradient_loss_kernel(%arg0: i32, %arg1: i32, %arg2: memref<2x4x16x16xf32, #tpu.memory_space<vmem>>, %arg3: memref<2x4x16x16xf32, #tpu.memory_space<vmem>>, %arg4: memref<1x1x16xf32, #tpu.memory_space<vmem>>, %arg5: memref<2x1x16xf32, #tpu.memory_space<vmem>>) attributes {dimension_semantics = [#tpu.dimension_semantics<parallel>, #tpu.dimension_semantics<arbitrary>], iteration_bounds = array<i64: 2, 1>, scalar_prefetch = 0 : i64, scratch_operands = 1 : i64, tpu.core_type = #tpu.core_type<tc>, window_params = [{transform_indices = @transform_0, window_bounds = array<i64: 2, 4, 16, 16>}, {transform_indices = @transform_1, window_bounds = array<i64: 2, 4, 16, 16>}, {transform_indices = @transform_2, window_bounds = array<i64: 1, 1, 16>}]} {
    %c0_i32 = arith.constant 0 : i32
    %0 = arith.cmpi eq, %arg1, %c0_i32 : i32
    %1 = arith.extui %0 : i1 to i32
    %c0_i32_0 = arith.constant 0 : i32
    %2 = arith.cmpi ne, %1, %c0_i32_0 : i32
    scf.if %2 {
      %cst_45 = arith.constant 0.000000e+00 : f32
      %52 = vector.broadcast %cst_45 : f32 to vector<1x1x16xf32>
      %c0_46 = arith.constant 0 : index
      %c0_47 = arith.constant 0 : index
      %c0_48 = arith.constant 0 : index
      %53 = vector.load %arg4[%c0_46, %c0_47, %c0_48] : memref<1x1x16xf32, #tpu.memory_space<vmem>>, vector<1x1x16xf32>
      tpu.vector_store %arg4[%c0_46, %c0_47, %c0_48], %52 {strides = array<i32>} : memref<1x1x16xf32, #tpu.memory_space<vmem>>, vector<1x1x16xf32>,
      %cst_49 = arith.constant 0.000000e+00 : f32
      %54 = vector.broadcast %cst_49 : f32 to vector<2x1x16xf32>
      %c0_50 = arith.constant 0 : index
      %c0_51 = arith.constant 0 : index
      %c0_52 = arith.constant 0 : index
      %55 = vector.load %arg5[%c0_50, %c0_51, %c0_52] : memref<2x1x16xf32, #tpu.memory_space<vmem>>, vector<2x1x16xf32>
      tpu.vector_store %arg5[%c0_50, %c0_51, %c0_52], %54 {strides = array<i32>} : memref<2x1x16xf32, #tpu.memory_space<vmem>>, vector<2x1x16xf32>,
    } else {
    }
    %c0 = arith.constant 0 : index
    %c0_1 = arith.constant 0 : index
    %c0_2 = arith.constant 0 : index
    %c0_3 = arith.constant 0 : index
    %3 = vector.load %arg3[%c0, %c0_1, %c0_2, %c0_3] : memref<2x4x16x16xf32, #tpu.memory_space<vmem>>, vector<2x1x16x16xf32>
    %4 = vector.shape_cast %3 : vector<2x1x16x16xf32> to vector<2x16x16xf32>
    %c0_4 = arith.constant 0 : index
    %c0_5 = arith.constant 0 : index
    %c0_6 = arith.constant 0 : index
    %c0_7 = arith.constant 0 : index
    %5 = vector.load %arg2[%c0_4, %c0_5, %c0_6, %c0_7] : memref<2x4x16x16xf32, #tpu.memory_space<vmem>>, vector<2x1x16x16xf32>
    %6 = vector.shape_cast %5 : vector<2x1x16x16xf32> to vector<2x16x16xf32>
    %7 = arith.subf %4, %6 : vector<2x16x16xf32>
    %c0_8 = arith.constant 0 : index
    %c1 = arith.constant 1 : index
    %c0_9 = arith.constant 0 : index
    %c0_10 = arith.constant 0 : index
    %8 = vector.load %arg3[%c0_8, %c1, %c0_9, %c0_10] : memref<2x4x16x16xf32, #tpu.memory_space<vmem>>, vector<2x1x16x16xf32>
    %9 = vector.shape_cast %8 : vector<2x1x16x16xf32> to vector<2x16x16xf32>
    %c0_11 = arith.constant 0 : index
    %c1_12 = arith.constant 1 : index
    %c0_13 = arith.constant 0 : index
    %c0_14 = arith.constant 0 : index
    %10 = vector.load %arg2[%c0_11, %c1_12, %c0_13, %c0_14] : memref<2x4x16x16xf32, #tpu.memory_space<vmem>>, vector<2x1x16x16xf32>
    %11 = vector.shape_cast %10 : vector<2x1x16x16xf32> to vector<2x16x16xf32>
    %12 = arith.subf %9, %11 : vector<2x16x16xf32>
    %13 = arith.addf %7, %12 : vector<2x16x16xf32>
    %c0_15 = arith.constant 0 : index
    %c2 = arith.constant 2 : index
    %c0_16 = arith.constant 0 : index
    %c0_17 = arith.constant 0 : index
    %14 = vector.load %arg3[%c0_15, %c2, %c0_16, %c0_17] : memref<2x4x16x16xf32, #tpu.memory_space<vmem>>, vector<2x1x16x16xf32>
    %15 = vector.shape_cast %14 : vector<2x1x16x16xf32> to vector<2x16x16xf32>
    %c0_18 = arith.constant 0 : index
    %c2_19 = arith.constant 2 : index
    %c0_20 = arith.constant 0 : index
    %c0_21 = arith.constant 0 : index
    %16 = vector.load %arg2[%c0_18, %c2_19, %c0_20, %c0_21] : memref<2x4x16x16xf32, #tpu.memory_space<vmem>>, vector<2x1x16x16xf32>
    %17 = vector.shape_cast %16 : vector<2x1x16x16xf32> to vector<2x16x16xf32>
    %18 = arith.subf %15, %17 : vector<2x16x16xf32>
    %19 = arith.addf %13, %18 : vector<2x16x16xf32>
    %c0_22 = arith.constant 0 : index
    %c3 = arith.constant 3 : index
    %c0_23 = arith.constant 0 : index
    %c0_24 = arith.constant 0 : index
    %20 = vector.load %arg3[%c0_22, %c3, %c0_23, %c0_24] : memref<2x4x16x16xf32, #tpu.memory_space<vmem>>, vector<2x1x16x16xf32>
    %21 = vector.shape_cast %20 : vector<2x1x16x16xf32> to vector<2x16x16xf32>
    %c0_25 = arith.constant 0 : index
    %c3_26 = arith.constant 3 : index
    %c0_27 = arith.constant 0 : index
    %c0_28 = arith.constant 0 : index
    %22 = vector.load %arg2[%c0_25, %c3_26, %c0_27, %c0_28] : memref<2x4x16x16xf32, #tpu.memory_space<vmem>>, vector<2x1x16x16xf32>
    %23 = vector.shape_cast %22 : vector<2x1x16x16xf32> to vector<2x16x16xf32>
    %24 = arith.subf %21, %23 : vector<2x16x16xf32>
    %25 = arith.addf %19, %24 : vector<2x16x16xf32>
    %c0_29 = arith.constant 0 : index
    %c0_30 = arith.constant 0 : index
    %c0_31 = arith.constant 0 : index
    %26 = vector.load %arg5[%c0_29, %c0_30, %c0_31] : memref<2x1x16xf32, #tpu.memory_space<vmem>>, vector<2x1x16xf32>
    %27 = vector.extract_strided_slice %25 {offsets = [0, 15, 0], sizes = [2, 1, 16], strides = [1, 1, 1]} : vector<2x16x16xf32> to vector<2x1x16xf32>
    %c0_32 = arith.constant 0 : index
    %c0_33 = arith.constant 0 : index
    %c0_34 = arith.constant 0 : index
    %28 = vector.load %arg5[%c0_32, %c0_33, %c0_34] : memref<2x1x16xf32, #tpu.memory_space<vmem>>, vector<2x1x16xf32>
    tpu.vector_store %arg5[%c0_32, %c0_33, %c0_34], %27 {strides = array<i32>} : memref<2x1x16xf32, #tpu.memory_space<vmem>>, vector<2x1x16xf32>,
    %c1_i32 = arith.constant 1 : i32
    %29 = tpu.dynamic_rotate %25 by %c1_i32 dim 2 : vector<2x16x16xf32>, i32 -> vector<2x16x16xf32>
    %30 = tpu.iota {dimensions = array<i32: 2>} : vector<2x16x16xi32>
    %c0_i32_35 = arith.constant 0 : i32
    %31 = vector.broadcast %c0_i32_35 : i32 to vector<2x16x16xi32>
    %32 = arith.cmpi sgt, %30, %31 : vector<2x16x16xi32>
    %cst = arith.constant 0.000000e+00 : f32
    %33 = vector.broadcast %cst : f32 to vector<2x16x16xf32>
    %34 = arith.select %32, %29, %33 : vector<2x16x16xi1>, vector<2x16x16xf32>
    %35 = arith.subf %25, %34 : vector<2x16x16xf32>
    %c1_i32_36 = arith.constant 1 : i32
    %36 = tpu.dynamic_rotate %25 by %c1_i32_36 dim 1 : vector<2x16x16xf32>, i32 -> vector<2x16x16xf32>
    %37 = tpu.iota {dimensions = array<i32: 1>} : vector<2x16x16xi32>
    %c0_i32_37 = arith.constant 0 : i32
    %38 = vector.broadcast %c0_i32_37 : i32 to vector<2x16x16xi32>
    %39 = arith.cmpi sgt, %37, %38 : vector<2x16x16xi32>
    %40 = vector.shape_cast %26 : vector<2x1x16xf32> to vector<2x1x16xf32>
    %41 = vector.broadcast %40 : vector<2x1x16xf32> to vector<2x16x16xf32>
    %42 = arith.select %39, %36, %41 : vector<2x16x16xi1>, vector<2x16x16xf32>
    %43 = arith.subf %25, %42 : vector<2x16x16xf32>
    %44 = arith.mulf %35, %35 : vector<2x16x16xf32>
    %45 = arith.mulf %43, %43 : vector<2x16x16xf32>
    %46 = arith.addf %44, %45 : vector<2x16x16xf32>
    %c0_38 = arith.constant 0 : index
    %c0_39 = arith.constant 0 : index
    %c0_40 = arith.constant 0 : index
    %47 = vector.load %arg4[%c0_38, %c0_39, %c0_40] : memref<1x1x16xf32, #tpu.memory_space<vmem>>, vector<1x1x16xf32>
    %cst_41 = arith.constant dense<0.000000e+00> : vector<16xf32>
    %48 = vector.multi_reduction <add>, %46, %cst_41 [0, 1] : vector<2x16x16xf32> to vector<16xf32>
    %49 = vector.shape_cast %48 : vector<16xf32> to vector<1x1x16xf32>
    %50 = arith.addf %47, %49 : vector<1x1x16xf32>
    %c0_42 = arith.constant 0 : index
    %c0_43 = arith.constant 0 : index
    %c0_44 = arith.constant 0 : index
    %51 = vector.load %arg4[%c0_42, %c0_43, %c0_44] : memref<1x1x16xf32, #tpu.memory_space<vmem>>, vector<1x1x16xf32>
    tpu.vector_store %arg4[%c0_42, %c0_43, %c0_44], %50 {strides = array<i32>} : memref<1x1x16xf32, #tpu.memory_space<vmem>>, vector<1x1x16xf32>,
    return
  }
  func.func @transform_0(%arg0: i32, %arg1: i32) -> (i32, i32, i32, i32) {
    %c0_i32 = arith.constant 0 : i32
    %c0_i32_0 = arith.constant 0 : i32
    %c0_i32_1 = arith.constant 0 : i32
    return %arg0, %c0_i32, %arg1, %c0_i32_0 : i32, i32, i32, i32
  }
  func.func @transform_1(%arg0: i32, %arg1: i32) -> (i32, i32, i32, i32) {
    %c0_i32 = arith.constant 0 : i32
    %c0_i32_0 = arith.constant 0 : i32
    %c0_i32_1 = arith.constant 0 : i32
    return %arg0, %c0_i32, %arg1, %c0_i32_0 : i32, i32, i32, i32
  }
  func.func @transform_2(%arg0: i32, %arg1: i32) -> (i32, i32, i32) {
    %c0_i32 = arith.constant 0 : i32
    %c0_i32_0 = arith.constant 0 : i32
    %c0_i32_1 = arith.constant 0 : i32
    return %arg0, %c0_i32, %c0_i32_0 : i32, i32, i32
  }
}

</mosaic_0001>

<llo_original>
// kernel: tpu_custom_call.1
$region0: #{tpu_custom_call.1}
  #allocation0 [shape = 'u32[]', space=smem, size = 0x4, offset = 0x4, fixed_abs, tag = 'smem constant byte address 0x4 - core index']
  #allocation1 [shape = 'u32[144,128]{1,0:T(1,128)}', space=vmem, size = 0x12000, scoped, tag = 'internal scratch']
  #allocation2 [shape = 'f32[2,1,16]{2,1,0:T(1,128)}', space=vmem, size = 0x400, scoped, tag = 'scratch operand']
  %s0 = inlined_call_operand.hbm [shape: f32[4,4,16,16], index: 0, kind: input, shape index: {}]
  %s1 = inlined_call_operand.hbm [shape: f32[4,4,16,16], index: 1, kind: input, shape index: {}]
  %s2 = inlined_call_operand.hbm [shape: f32[2,1,16], index: 2, kind: output, shape index: {}]
  %s3 = sld [smem:[#allocation0]]
  $region53: #{tpu_custom_call.1} parent=0
    _
  %s5 = ssub.s32 1, %s3
  %s6 = scalar_select 0, %s5, %s3
  $region1: #{tpu_custom_call.1} parent=0
    #allocation3 [shape = 'u8[131072]{0}', space=vmem, size = 0x20000, scoped, tag = 'input window, operand 0']
    #allocation4 [shape = 's32[2]{0}', space=sflag, size = 0x8, scoped, tag = 'scoped memory for tpu_custom_call.1']
    #allocation5 [shape = 's32[2]{0}', space=sflag, size = 0x8, scoped, tag = 'scoped memory for tpu_custom_call.1']
    #allocation6 [shape = 'u8[131072]{0}', space=vmem, size = 0x20000, scoped, tag = 'input window, operand 1']
    #allocation7 [shape = 's32[2]{0}', space=sflag, size = 0x8, scoped, tag = 'scoped memory for tpu_custom_call.1']
    #allocation8 [shape = 'u8[1024]{0}', space=vmem, size = 0x400, scoped, tag = 'output window, operand 0']
    %7 = vsyncpa [#allocation4], 0
    %s8 = scalar_lea.sflag [#allocation4], 1
    %9 = vsyncpa %s8, 0
    %10 = vsyncpa [#allocation7], 0
    %s11 = scalar_lea.sflag [#allocation7], 1
    %12 = vsyncpa %s11, 0
    %13 = vsyncpa [#allocation5], 0
    %s14 = scalar_lea.sflag [#allocation5], 1
    %15 = vsyncpa %s14, 0
    loop: start=0, step=1, limit=4
    $region2: #{tpu_custom_call.1} parent=1 // loop_pre_header
      _
    $region3: #{tpu_custom_call.1} parent=1 // loop_header
      %s17 = sphi 0, %s21
      %p18 = scmp.ge.s32.totalorder %s17, 4
      %s24 = sphi 0, %s36
      %s25 = sphi 0, %s32
      %s26 = sphi 0, %s24
      %s27 = sphi 0, %s25
      %s28 = sphi 0, %s26
      %s29 = sphi 0, %s27
      %s41 = sphi 0, %s43
      %s44 = sphi 0, %s41
      %s45 = sphi 0, %s44
      %s61 = sphi 0, %s45
      %s69 = sphi 0, %s71
      %s72 = sphi 0, %s69
      %s73 = sphi 0, %s72
      %s89 = sphi 0, %s73
      %s95 = sphi 0, %s97
      %s98 = sphi 0, %s95
      %s99 = sphi 0, %s98
      %s115 = sphi 0, %s99
    $region4: #{tpu_custom_call.1} parent=1 // loop_header_branch
      %20 = sbr.rel (%p18) target = $region8
    $region5: #{tpu_custom_call.1} parent=1 // loop_body
      %s22 = ssub.s32 %s17, 1
      %s23 = ssub.s32 %s17, 2
      %s30 = sadd.s32 1, %s25
      %p31 = scmp.ge.s32.totalorder %s30, 1
      %s32 = scalar_select %p31, 0, %s30
      %s33 = sadd.s32 1, %s24
      %s34 = scalar_select %p31, %s33, %s24
      %p35 = scmp.ge.s32.totalorder %s34, 2
      %s36 = scalar_select %p35, 0, %s34
      %s37 = ssub.s32 %s24, %s36
      %s38 = ssub.s32 %s25, %s32
      %s39 = sor.u32 %s37, %s38
      %p40 = scmp.eq.s32.totalorder %s39, 0
      %s42 = sadd.s32 %s41, 1
      %s43 = scalar_select %p40, %s41, %s42
      %p46 = pneg %p40
      %p47 = scmp.eq.s32.totalorder %s17, 1
      %p48 = por %p46, %p47
      %p49 = scmp.ne.s32.totalorder %s41, %s44
      %p50 = scmp.eq.s32.totalorder %s17, 0
      %p51 = por %p49, %p50
      %p52 = scmp.ne.s32.totalorder %s41, %s44
      %p53 = scmp.eq.s32.totalorder %s22, 1
      %p54 = por %p52, %p53
      %p55 = scmp.ne.s32.totalorder %s44, %s45
      %p56 = scmp.eq.s32.totalorder %s22, 0
      %p57 = por %p55, %p56
      %p58 = scmp.ne.s32.totalorder %s44, %s45
      %p59 = scmp.eq.s32.totalorder %s23, 1
      %p60 = por %p58, %p59
      %p62 = scmp.ne.s32.totalorder %s45, %s61
      %p63 = scmp.eq.s32.totalorder %s23, 0
      %p64 = por %p62, %p63
      %s65 = ssub.s32 %s24, %s36
      %s66 = ssub.s32 %s25, %s32
      %s67 = sor.u32 %s65, %s66
      %p68 = scmp.eq.s32.totalorder %s67, 0
      %s70 = sadd.s32 %s69, 1
      %s71 = scalar_select %p68, %s69, %s70
      %p74 = pneg %p68
      %p75 = scmp.eq.s32.totalorder %s17, 1
      %p76 = por %p74, %p75
      %p77 = scmp.ne.s32.totalorder %s69, %s72
      %p78 = scmp.eq.s32.totalorder %s17, 0
      %p79 = por %p77, %p78
      %p80 = scmp.ne.s32.totalorder %s69, %s72
      %p81 = scmp.eq.s32.totalorder %s22, 1
      %p82 = por %p80, %p81
      %p83 = scmp.ne.s32.totalorder %s72, %s73
      %p84 = scmp.eq.s32.totalorder %s22, 0
      %p85 = por %p83, %p84
      %p86 = scmp.ne.s32.totalorder %s72, %s73
      %p87 = scmp.eq.s32.totalorder %s23, 1
      %p88 = por %p86, %p87
      %p90 = scmp.ne.s32.totalorder %s73, %s89
      %p91 = scmp.eq.s32.totalorder %s23, 0
      %p92 = por %p90, %p91
      %s93 = ssub.s32 %s24, %s36
      %p94 = scmp.eq.s32.totalorder %s93, 0
      %s96 = sadd.s32 %s95, 1
      %s97 = scalar_select %p94, %s95, %s96
      %p100 = pneg %p94
      %p101 = scmp.eq.s32.totalorder %s17, 1
      %p102 = por %p100, %p101
      %p103 = scmp.ne.s32.totalorder %s95, %s98
      %p104 = scmp.eq.s32.totalorder %s17, 0
      %p105 = por %p103, %p104
      %p106 = scmp.ne.s32.totalorder %s95, %s98
      %p107 = scmp.eq.s32.totalorder %s22, 1
      %p108 = por %p106, %p107
      %p109 = scmp.ne.s32.totalorder %s98, %s99
      %p110 = scmp.eq.s32.totalorder %s22, 0
      %p111 = por %p109, %p110
      %p112 = scmp.ne.s32.totalorder %s98, %s99
      %p113 = scmp.eq.s32.totalorder %s23, 1
      %p114 = por %p112, %p113
      %p116 = scmp.ne.s32.totalorder %s99, %s115
      %p117 = scmp.eq.s32.totalorder %s23, 0
      %p118 = por %p116, %p117
      %p119 = scmp.le.s32.totalorder 1, %s17
      %p120 = scmp.lt.s32.totalorder %s17, 3
      %p121 = pnand %p119, %p120
      %p122 = pneg %p121
      // Predicated region
      $region9: #{tpu_custom_call.1} parent=5 // pred_check
        _
      $region10: #{tpu_custom_call.1} parent=5 // pred_check_branch
        %124 = sbr.rel (%p121) target = $region12
      $region11: #{tpu_custom_call.1} parent=5 // pred_region
        %s125 = ssub.s32 %s17, 1
      $region12: #{tpu_custom_call.1} parent=5 // pred_fallthru
        _
      %p126 = scmp.lt.s32.totalorder %s17, 2
      // Predicated region
      $region13: #{tpu_custom_call.1} parent=5 // pred_check
        %p127 = pneg %p126
      $region14: #{tpu_custom_call.1} parent=5 // pred_check_branch
        %129 = sbr.rel (%p127) target = $region16
      $region15: #{tpu_custom_call.1} parent=5 // pred_region
        // Predicated region
        $region17: #{tpu_custom_call.1} parent=15 // pred_check
          %p130 = pneg %p51
        $region18: #{tpu_custom_call.1} parent=15 // pred_check_branch
          %132 = sbr.rel (%p130) target = $region20
        $region19: #{tpu_custom_call.1} parent=15 // pred_region
          %s133 = sand.u32 %s41, 1
          %s134 = scalar_lea.sflag [#allocation4], %s133
          %s135 = sand.u32 %s41, 1
          %s136 = smul.addr %s135, 128
          %s137 = scalar_lea.vmem [#allocation3], %s136
          %s138 = smul.u32 2, %s24
          %s139 = smul.u32 2, %s25
          %s141 = ssub.s32 2048, 2048
          %142 = vsyncadd %s134, %s141
          %s143 = smul.addr %s138, 8
          %s144 = sadd.s32 %s139, %s143
          %s145 = smul.addr %s144, 128
          %s146 = scalar_lea.hbm %s0, %s145
          %s147 = sshll.u32 %s137, 4
          %s148 = int_to_ptr.vmem [resolvable:$true] %s147
          %153 = dma.hbm_to_vmem [thread:$0]  %s146, 2048, %s148, %s134, 128, 128, 8
        $region20: #{tpu_custom_call.1} parent=15 // pred_fallthru
          _
        // Predicated region
        $region21: #{tpu_custom_call.1} parent=15 // pred_check
          %p154 = pneg %p79
        $region22: #{tpu_custom_call.1} parent=15 // pred_check_branch
          %156 = sbr.rel (%p154) target = $region24
        $region23: #{tpu_custom_call.1} parent=15 // pred_region
          %s157 = sand.u32 %s69, 1
          %s158 = scalar_lea.sflag [#allocation7], %s157
          %s159 = sand.u32 %s69, 1
          %s160 = smul.addr %s159, 128
          %s161 = scalar_lea.vmem [#allocation6], %s160
          %s162 = smul.u32 2, %s24
          %s163 = smul.u32 2, %s25
          %s165 = ssub.s32 2048, 2048
          %166 = vsyncadd %s158, %s165
          %s167 = smul.addr %s162, 8
          %s168 = sadd.s32 %s163, %s167
          %s169 = smul.addr %s168, 128
          %s170 = scalar_lea.hbm %s1, %s169
          %s171 = sshll.u32 %s161, 4
          %s172 = int_to_ptr.vmem [resolvable:$true] %s171
          %177 = dma.hbm_to_vmem [thread:$0]  %s170, 2048, %s172, %s158, 128, 128, 8
        $region24: #{tpu_custom_call.1} parent=15 // pred_fallthru
          _
      $region16: #{tpu_custom_call.1} parent=5 // pred_fallthru
        _
      %p178 = scmp.le.s32.totalorder 1, %s17
      %p179 = scmp.lt.s32.totalorder %s17, 3
      %p180 = pnand %p178, %p179
      %p181 = pneg %p180
      // Predicated region
      $region25: #{tpu_custom_call.1} parent=5 // pred_check
        _
      $region26: #{tpu_custom_call.1} parent=5 // pred_check_branch
        %183 = sbr.rel (%p180) target = $region28
      $region27: #{tpu_custom_call.1} parent=5 // pred_region
        %s184 = ssub.s32 %s17, 1
        %s185 = sand.u32 %s44, 1
        %s186 = scalar_lea.sflag [#allocation4], %s185
        %s187 = sand.u32 %s44, 1
        %s188 = smul.addr %s187, 128
        %s189 = scalar_lea.vmem [#allocation3], %s188
        // Predicated region
        $region29: #{tpu_custom_call.1} parent=27 // pred_check
          %p190 = pneg %p57
        $region30: #{tpu_custom_call.1} parent=27 // pred_check_branch
          %192 = sbr.rel (%p190) target = $region32
        $region31: #{tpu_custom_call.1} parent=27 // pred_region
          %193 = dma.done %s186, 2048
        $region32: #{tpu_custom_call.1} parent=27 // pred_fallthru
          _
        %s194 = sand.u32 %s72, 1
        %s195 = scalar_lea.sflag [#allocation7], %s194
        %s196 = sand.u32 %s72, 1
        %s197 = smul.addr %s196, 128
        %s198 = scalar_lea.vmem [#allocation6], %s197
        // Predicated region
        $region33: #{tpu_custom_call.1} parent=27 // pred_check
          %p199 = pneg %p85
        $region34: #{tpu_custom_call.1} parent=27 // pred_check_branch
          %201 = sbr.rel (%p199) target = $region36
        $region35: #{tpu_custom_call.1} parent=27 // pred_region
          %202 = dma.done %s195, 2048
        $region36: #{tpu_custom_call.1} parent=27 // pred_fallthru
          _
        %s203 = sand.u32 %s44, 1
        %s204 = scalar_lea.sflag [#allocation4], %s203
        %s205 = sand.u32 %s44, 1
        %s206 = smul.addr %s205, 128
        %s207 = scalar_lea.vmem [#allocation3], %s206
        %p208 = pneg %p57
        %p209 = pneg %p54
        %s210 = sand.u32 %s72, 1
        %s211 = scalar_lea.sflag [#allocation7], %s210
        %s212 = sand.u32 %s72, 1
        %s213 = smul.addr %s212, 128
        %s214 = scalar_lea.vmem [#allocation6], %s213
        %p215 = pneg %p85
        %p216 = pneg %p82
        %p217 = pneg %p111
        %p218 = pneg %p108
        %s219 = sand.u32 %s98, 1
        %s220 = scalar_lea.sflag [#allocation5], %s219
        %s221 = sand.u32 %s98, 1
        %s222 = scalar_lea.vmem [#allocation8], %s221
        %s223 = smul.u32 2, %s26
        %s224 = smul.u32 2, %s27
        %s225 = smul.u32 2, %s26
        %s226 = smul.u32 2, %s27
        %p227 = scmp.eq.s32.totalorder %s27, 0
        // Predicated region
        $region37: #{tpu_custom_call.1} parent=27 // pred_check
          %p228 = pneg %p227
        $region38: #{tpu_custom_call.1} parent=27 // pred_check_branch
          %230 = sbr.rel (%p228) target = $region40
        $region39: #{tpu_custom_call.1} parent=27 // pred_region
          %vm231 = vcmask 122880
          %232 = vst.msk [vmem:[%s222] sm:$0x1] %vm231, 0.0
          %233 = vst.msk [vmem:[#allocation2] sm:$0x1] %vm231, 0.0
          %234 = vst.msk [vmem:[#allocation2 + $0x1] sm:$0x1] %vm231, 0.0
        $region40: #{tpu_custom_call.1} parent=27 // pred_fallthru
          _
        %v235 = vld [vmem:[%s198] sm:$0xff]
        %v236 = vld [vmem:[%s198 + $0x8] sm:$0xff]
        %v237 = vld [vmem:[%s198 + $0x40] sm:$0xff]
        %v238 = vld [vmem:[%s198 + $0x48] sm:$0xff]
        %v239 = vld [vmem:[%s189] sm:$0xff]
        %v240 = vld [vmem:[%s189 + $0x8] sm:$0xff]
        %v241 = vld [vmem:[%s189 + $0x40] sm:$0xff]
        %v242 = vld [vmem:[%s189 + $0x48] sm:$0xff]
        %v243 = vsub.f32 %v235, %v239
        %v244 = vsub.f32 %v236, %v240
        %v245 = vsub.f32 %v237, %v241
        %v246 = vsub.f32 %v238, %v242
        %s247 = scalar_lea.vmem %s198, 16 [#allocation6]
        %v248 = vld [vmem:[%s247] sm:$0xff]
        %v249 = vld [vmem:[%s247 + $0x8] sm:$0xff]
        %v250 = vld [vmem:[%s247 + $0x40] sm:$0xff]
        %v251 = vld [vmem:[%s247 + $0x48] sm:$0xff]
        %s252 = scalar_lea.vmem %s189, 16 [#allocation3]
        %v253 = vld [vmem:[%s252] sm:$0xff]
        %v254 = vld [vmem:[%s252 + $0x8] sm:$0xff]
        %v255 = vld [vmem:[%s252 + $0x40] sm:$0xff]
        %v256 = vld [vmem:[%s252 + $0x48] sm:$0xff]
        %v257 = vsub.f32 %v248, %v253
        %v258 = vsub.f32 %v249, %v254
        %v259 = vsub.f32 %v250, %v255
        %v260 = vsub.f32 %v251, %v256
        %v261 = vadd.f32 %v243, %v257
        %v262 = vadd.f32 %v244, %v258
        %v263 = vadd.f32 %v245, %v259
        %v264 = vadd.f32 %v246, %v260
        %s265 = scalar_lea.vmem %s198, 32 [#allocation6]
        %v266 = vld [vmem:[%s265] sm:$0xff]
        %v267 = vld [vmem:[%s265 + $0x8] sm:$0xff]
        %v268 = vld [vmem:[%s265 + $0x40] sm:$0xff]
        %v269 = vld [vmem:[%s265 + $0x48] sm:$0xff]
        %s270 = scalar_lea.vmem %s189, 32 [#allocation3]
        %v271 = vld [vmem:[%s270] sm:$0xff]
        %v272 = vld [vmem:[%s270 + $0x8] sm:$0xff]
        %v273 = vld [vmem:[%s270 + $0x40] sm:$0xff]
        %v274 = vld [vmem:[%s270 + $0x48] sm:$0xff]
        %v275 = vsub.f32 %v266, %v271
        %v276 = vsub.f32 %v267, %v272
        %v277 = vsub.f32 %v268, %v273
        %v278 = vsub.f32 %v269, %v274
        %v279 = vadd.f32 %v261, %v275
        %v280 = vadd.f32 %v262, %v276
        %v281 = vadd.f32 %v263, %v277
        %v282 = vadd.f32 %v264, %v278
        %s283 = scalar_lea.vmem %s198, 48 [#allocation6]
        %v284 = vld [vmem:[%s283] sm:$0xff]
        %v285 = vld [vmem:[%s283 + $0x8] sm:$0xff]
        %v286 = vld [vmem:[%s283 + $0x40] sm:$0xff]
        %v287 = vld [vmem:[%s283 + $0x48] sm:$0xff]
        %s288 = scalar_lea.vmem %s189, 48 [#allocation3]
        %v289 = vld [vmem:[%s288] sm:$0xff]
        %v290 = vld [vmem:[%s288 + $0x8] sm:$0xff]
        %v291 = vld [vmem:[%s288 + $0x40] sm:$0xff]
        %v292 = vld [vmem:[%s288 + $0x48] sm:$0xff]
        %v293 = vsub.f32 %v284, %v289
        %v294 = vsub.f32 %v285, %v290
        %v295 = vsub.f32 %v286, %v291
        %v296 = vsub.f32 %v287, %v292
        %v297 = vadd.f32 %v279, %v293
        %v298 = vadd.f32 %v280, %v294
        %v299 = vadd.f32 %v281, %v295
        %v300 = vadd.f32 %v282, %v296
        %v301 = vld [vmem:[#allocation2] sm:$0x1]
        %v302 = vld [vmem:[#allocation2 + $0x1] sm:$0x1]
        %vm303 = vcmask 130055
        %304 = vst.msk [vmem:[#allocation2 - $0x7] sm:$0x80] %vm303, %v298
        %305 = vst.msk [vmem:[#allocation2 - $0x6] sm:$0x80] %vm303, %v300
        %vm306 = vcmask 1047680
        %307 = vrot.lane.b32.xlu0 %v297, 16
        %v308 = vpop.permute.xlu0 %307
        %v309 = vsel %vm306, %v308, %v297
        %310 = vrot.lane.b32.xlu0 %v298, 16
        %v311 = vpop.permute.xlu0 %310
        %v312 = vsel %vm306, %v311, %v298
        %313 = vrot.lane.b32.xlu0 %v299, 16
        %v314 = vpop.permute.xlu0 %313
        %v315 = vsel %vm306, %v314, %v299
        %316 = vrot.lane.b32.xlu0 %v300, 16
        %v317 = vpop.permute.xlu0 %316
        %v318 = vsel %vm306, %v317, %v300
        %319 = vrot.lane.b32.xlu0 %v309, 16
        %v320 = vpop.permute.xlu0 %319
        %321 = vrot.lane.b32.xlu0 %v312, 16
        %v322 = vpop.permute.xlu0 %321
        %323 = vrot.lane.b32.xlu0 %v315, 16
        %v324 = vpop.permute.xlu0 %323
        %325 = vrot.lane.b32.xlu0 %v318, 16
        %v326 = vpop.permute.xlu0 %325
        %v327 = vsel %vm306, %v320, %v297
        %v328 = vsel %vm306, %v322, %v298
        %v329 = vsel %vm306, %v324, %v299
        %v330 = vsel %vm306, %v326, %v300
        %v331 = vlaneseq
        %v332 = vand.u32 %v331, 127
        %vm333 = vcmp.gt.s32.totalorder %v332, 0
        %338 = vrot.lane.b32.xlu0 %v327, 113
        %v339 = vpop.permute.xlu0 %338
        %340 = vrot.lane.b32.xlu0 %v328, 113
        %v341 = vpop.permute.xlu0 %340
        %342 = vrot.lane.b32.xlu0 %v329, 113
        %v343 = vpop.permute.xlu0 %342
        %344 = vrot.lane.b32.xlu0 %v330, 113
        %v345 = vpop.permute.xlu0 %344
        %v350 = vsel %vm333, %v339, 0.0
        %v351 = vsel %vm333, %v341, 0.0
        %v352 = vsel %vm333, %v343, 0.0
        %v353 = vsel %vm333, %v345, 0.0
        %v354 = vsub.f32 %v297, %v350
        %v355 = vsub.f32 %v298, %v351
        %v356 = vsub.f32 %v299, %v352
        %v357 = vsub.f32 %v300, %v353
        %v358 = vrot.slane %v297, 7
        %v359 = vrot.slane %v299, 7
        %v360 = vrot.slane %v298, 7
        %v361 = vrot.slane %v300, 7
        %v362 = vlaneseq
        %v363 = vshrl.u32 %v362, 7
        %vm364 = vcmp.lt.s32.totalorder %v363, 1
        %v365 = vsel %vm364, %v358, %v360
        %v366 = vsel %vm364, %v359, %v361
        %v367 = vsel %vm364, %v360, %v358
        %v368 = vsel %vm364, %v361, %v359
        %v369 = vadd.s32 %v363, 8
        %vm370 = vcmp.gt.s32.totalorder %v363, 0
        %vm371 = vcmp.gt.s32.totalorder %v369, 0
        %v374 = vlaneseq
        %v375 = vshrl.u32 %v374, 7
        %v376 = vsub.s32 0, %v375
        %v377 = vrot.slane %v301, %v376
        %v378 = vlaneseq
        %v379 = vshrl.u32 %v378, 7
        %v380 = vsub.s32 0, %v379
        %v381 = vrot.slane %v302, %v380
        %v384 = vsel %vm370, %v367, %v377
        %v385 = vsel %vm371, %v365, %v377
        %v386 = vsel %vm370, %v368, %v381
        %v387 = vsel %vm371, %v366, %v381
        %v388 = vsub.f32 %v297, %v384
        %v389 = vsub.f32 %v298, %v385
        %v390 = vsub.f32 %v299, %v386
        %v391 = vsub.f32 %v300, %v387
        %v392 = vmul.f32 %v354, %v354
        %v393 = vmul.f32 %v355, %v355
        %v394 = vmul.f32 %v356, %v356
        %v395 = vmul.f32 %v357, %v357
        %v396 = vmul.f32 %v388, %v388
        %v397 = vmul.f32 %v389, %v389
        %v398 = vmul.f32 %v390, %v390
        %v399 = vmul.f32 %v391, %v391
        %v400 = vadd.f32 %v392, %v396
        %v401 = vadd.f32 %v393, %v397
        %v402 = vadd.f32 %v394, %v398
        %v403 = vadd.f32 %v395, %v399
        %v404 = vld [vmem:[%s222] sm:$0x1]
        %vm405 = vcmask 130048
        %v406 = vsel %vm405, %v400, 0.0
        %v407 = vsel %vm405, %v401, 0.0
        %v408 = vadd.f32 %v406, %v407
        %v409 = vsel %vm405, %v402, 0.0
        %v410 = vadd.f32 %v408, %v409
        %v411 = vsel %vm405, %v403, 0.0
        %v412 = vadd.f32 %v410, %v411
        %v413 = vrot.slane %v412, 4
        %v414 = vadd.f32 %v412, %v413
        %v415 = vrot.slane %v414, 2
        %v416 = vadd.f32 %v414, %v415
        %v417 = vrot.slane %v416, 1
        %v418 = vadd.f32 %v416, %v417
        %v419 = vadd.f32 %v404, %v418
        %vm420 = vcmask 122880
        %421 = vst.msk [vmem:[%s222] sm:$0x1] %vm420, %v419
        %s422 = sand.u32 %s98, 1
        %s423 = scalar_lea.sflag [#allocation5], %s422
        %s424 = sand.u32 %s98, 1
        %s425 = scalar_lea.vmem [#allocation8], %s424
        // Predicated region
        $region41: #{tpu_custom_call.1} parent=27 // pred_check
          %p426 = pneg %p108
        $region42: #{tpu_custom_call.1} parent=27 // pred_check_branch
          %428 = sbr.rel (%p426) target = $region44
        $region43: #{tpu_custom_call.1} parent=27 // pred_region
          %s430 = ssub.s32 16, 16
          %431 = vsyncadd %s423, %s430
          %s432 = smul.addr %s26, 16
          %s433 = scalar_lea.hbm %s2, %s432
          %s435 = sshll.u32 %s425, 4
          %s436 = int_to_ptr.vmem [resolvable:$true] %s435
          %438 = dma.vmem_to_hbm [thread:$0]  %s436, 16, %s433, %s423
        $region44: #{tpu_custom_call.1} parent=27 // pred_fallthru
          _
      $region28: #{tpu_custom_call.1} parent=5 // pred_fallthru
        _
      %p439 = scmp.le.s32.totalorder 2, %s17
      // Predicated region
      $region45: #{tpu_custom_call.1} parent=5 // pred_check
        %p440 = pneg %p439
      $region46: #{tpu_custom_call.1} parent=5 // pred_check_branch
        %442 = sbr.rel (%p440) target = $region48
      $region47: #{tpu_custom_call.1} parent=5 // pred_region
        %s443 = ssub.s32 %s17, 2
        // Predicated region
        $region49: #{tpu_custom_call.1} parent=47 // pred_check
          %p444 = pneg %p114
        $region50: #{tpu_custom_call.1} parent=47 // pred_check_branch
          %446 = sbr.rel (%p444) target = $region52
        $region51: #{tpu_custom_call.1} parent=47 // pred_region
          %s447 = sand.u32 %s99, 1
          %s448 = scalar_lea.sflag [#allocation5], %s447
          %s449 = sand.u32 %s99, 1
          %s450 = scalar_lea.vmem [#allocation8], %s449
          %451 = dma.done %s448, 16
        $region52: #{tpu_custom_call.1} parent=47 // pred_fallthru
          _
      $region48: #{tpu_custom_call.1} parent=5 // pred_fallthru
        _
    $region6: #{tpu_custom_call.1} parent=1 // loop_footer
      %s21 = sadd.s32 1, %s17
    $region7: #{tpu_custom_call.1} parent=1 // loop_footer_branch
      %16 = sbr.rel target = $region3
    $region8: #{tpu_custom_call.1} parent=1 // loop_exit
      _
    %452 = vsyncpa [#allocation4], 1
    %s453 = scalar_lea.sflag [#allocation4], 1
    %454 = vsyncpa %s453, 1
    %455 = vsyncpa [#allocation7], 1
    %s456 = scalar_lea.sflag [#allocation7], 1
    %457 = vsyncpa %s456, 1
    %458 = vsyncpa [#allocation5], 1
    %s459 = scalar_lea.sflag [#allocation5], 1
    %460 = vsyncpa %s459, 1

</llo_original>
